<compile_context>
chip_gen: v7x
topology: tpu7x:2x2x1
jax: 0.10.0
libtpu: 0.0.40
codegen_flags: <defaults>
</compile_context>

<pallas_src>
import functools

import jax
import jax.numpy as jnp
from jax import lax
from jax.experimental import pallas as pl
from jax.experimental.pallas import tpu as pltpu


def conv_block_kernel(x_ref, w_ref, b_ref, mask_ref, o_ref, *, mm_dtype):
    # x_ref:    (1, C, W)    W = B*(L+8); B sequences, each padded with 4 zeros per side,
    #                        concatenated along lanes (f32)
    # w_ref:    (C, 5C)      mm_dtype; w_ref[o, k*C + i] = torch_weight[o, i, k]
    # b_ref:    (C, 1)       f32 bias
    # mask_ref: (1, Wc)      f32; 1 on valid conv-1 output columns, 0 elsewhere
    # o_ref:    (1, C, Wm)   window-max slab (stride-2 selection happens in the wrapper)
    C = x_ref.shape[1]
    W = x_ref.shape[2]
    Wc = W - 4                     # conv-1 output width
    Wr = W - 8                     # conv-2 output width
    Wm = W - 12                    # pooling window-max width

    xslab = x_ref[0]               # (C, W)  f32
    w_cat = w_ref[...]             # (C, 5C) mm_dtype
    bias = b_ref[...]              # (C, 1)  f32
    mask = mask_ref[...]           # (1, Wc) f32

    def conv(src_mm, width):
        # im2col: 5 lane-shifted views of the (already mm_dtype) source stacked along
        # sublanes feed ONE MXU matmul (f32 accumulate).
        rhs = jnp.concatenate([src_mm[:, k:k + width] for k in range(5)], axis=0)
        return jnp.dot(w_cat, rhs, preferred_element_type=jnp.float32) + bias

    # ---- conv #1 + (inplace) ReLU; single cast, then zero per-element edge columns.
    # With 4 zero-pad columns per side in the input slab, the masked h already contains
    # the 2 zero columns conv #2 needs on each side -> no padded scratch round trip.
    h = jnp.maximum(conv(xslab.astype(mm_dtype), Wc), 0.0) * mask

    # ---- conv #2 (shared weights/bias) + residual add + ReLU (all f32 outside the MXU).
    r = jnp.maximum(conv(h.astype(mm_dtype), Wr) + xslab[:, 4:W - 4], 0.0)

    # ---- MaxPool1d(kernel=5) window max via 4 lane-shifted f32 max passes.
    # TODO(synk): the stride-2 could be folded into these passes with strided lane reads
    # from a VMEM scratch, halving the max work; kept full-width for lowering robustness.
    m = r[:, 0:Wm]
    for k in range(1, 5):
        m = jnp.maximum(m, r[:, k:k + Wm])

    # Full-block, lane-dense store; kept columns are m[:, e*Lp + 2*j] (wrapper selects).
    o_ref[0] = m.astype(o_ref.dtype)


def _tensorcores_per_device() -> int:
    """Heuristic TC count: 2 on v4/v5p/v7x-class parts, 1 on v5e/v6e."""
    try:
        kind = jax.devices()[0].device_kind.lower()
    except Exception:
        return 1
    if "lite" in kind or "v5e" in kind or "v6" in kind:
        return 1
    if any(tag in kind for tag in ("v7", "v4", "v5p", "v5 p")):
        return 2
    return 1


def _step_vmem_bytes(C, W, mm_bytes):
    """Rough per-step VMEM footprint (double-buffered blocks + temporaries)."""
    in_blk = C * W * 4
    out_blk = C * (W - 12) * 4
    rhs = 5 * C * W * mm_bytes           # im2col buffer for one conv
    inter = 3 * C * W * 4                # h / r / m style f32 intermediates
    const = 5 * C * C * mm_bytes + C * 4 + (W - 4) * 4
    return 2 * in_blk + 2 * out_blk + 2 * rhs + inter + const


@functools.partial(jax.jit, static_argnames=("max_batch_per_step", "mm_dtype"))
def convolutional_block(x, w, b, *, max_batch_per_step=32, mm_dtype=jnp.bfloat16):
    """x: (N, C, L) float32; w: (C_out, C_in, 5); b: (C,) — PyTorch Conv1d layout.

    mm_dtype=jnp.float32 is the accuracy escape hatch (bf16 MXU operands bound the
    absolute error at ~1e-2 for unit-scale inputs)."""
    N, C, L = x.shape
    assert C % 8 == 0, "channels must be a multiple of 8 (f32 sublane tiling)"
    assert L >= 5, "need L >= 5 so MaxPool1d(5, stride=2) produces output"
    assert w.shape == (C, C, 5) and b.shape == (C,)

    Lp = L + 8                           # per-element padded length (4 zeros each side)
    Lout = (L - 5) // 2 + 1              # MaxPool1d(5, stride=2), no padding
    mm_bytes = jnp.dtype(mm_dtype).itemsize

    # ---- batch-per-step: as large as the VMEM budget allows (sel matrix is gone, so the
    # budget is just the slabs themselves); keep headroom under v7x's scoped limit.
    VMEM_BUDGET = 20 * 1024 * 1024
    B = max(1, min(N, max_batch_per_step))
    while B > 1 and _step_vmem_bytes(C, B * Lp, mm_bytes) > VMEM_BUDGET:
        B -= 1

    # Split into >=2 grid steps only where a second TensorCore exists; on 1-TC v5e/v6e the
    # grid is a serial loop and splitting is pure overhead.
    if _tensorcores_per_device() >= 2 and N >= 2:
        B = min(B, pl.cdiv(N, 2))

    G = pl.cdiv(N, B)
    N_pad = G * B
    W = B * Lp                           # lane width of one step's input slab
    Wc = W - 4
    Wm = W - 12

    # ---- layout plumbing (single fused pad+transpose+reshape copy in the wrapper) ----
    xp = jnp.pad(x.astype(jnp.float32),
                 ((0, N_pad - N), (0, 0), (4, 4)))               # (N_pad, C, Lp)
    xslab = xp.reshape(G, B, C, Lp).transpose(0, 2, 1, 3).reshape(G, C, W)

    # Taps concatenated along the contraction dim: w_cat[o, k*C + i] = w[o, i, k].
    w_cat = jnp.transpose(w, (0, 2, 1)).reshape(C, 5 * C).astype(mm_dtype)
    bias = b.reshape(C, 1).astype(jnp.float32)

    # Valid conv-1 output columns for each element live at (col % Lp) in [2, L+2).
    col = jnp.arange(Wc)
    mask = ((col % Lp >= 2) & (col % Lp < L + 2)).astype(jnp.float32).reshape(1, Wc)

    vmem_limit = int(min(max(32 * 1024 * 1024,
                             1.25 * _step_vmem_bytes(C, W, mm_bytes)),
                         128 * 1024 * 1024))

    y = pl.pallas_call(
        functools.partial(conv_block_kernel, mm_dtype=mm_dtype),
        out_shape=jax.ShapeDtypeStruct((G, C, Wm), x.dtype),
        grid_spec=pltpu.PrefetchScalarGridSpec(
            num_scalar_prefetch=0,
            grid=(G,),
            in_specs=[
                pl.BlockSpec((1, C, W), lambda i: (i, 0, 0)),
                pl.BlockSpec((C, 5 * C), lambda i: (0, 0)),
                pl.BlockSpec((C, 1), lambda i: (0, 0)),
                pl.BlockSpec((1, Wc), lambda i: (0, 0)),
            ],
            out_specs=pl.BlockSpec((1, C, Wm), lambda i: (i, 0, 0)),
        ),
        compiler_params=pltpu.CompilerParams(
            dimension_semantics=("parallel",),
            vmem_limit_bytes=vmem_limit),
    )(xslab, w_cat, bias, mask)

    # (G, C, Wm) window-max slab -> per-element stride-2 selection + batch unfold.
    # Kept pooled value j of element e is column e*Lp + 2*j of the slab.
    y = jnp.pad(y, ((0, 0), (0, 0), (0, W - Wm)))                 # back to stride Lp
    y = y.reshape(G, C, B, Lp)[..., 0:2 * Lout - 1:2]             # (G, C, B, Lout)
    y = y.transpose(0, 2, 1, 3).reshape(N_pad, C, Lout)
    return y[:N]


def reference(x, w, b):
    """Pure-JAX f32 reference matching the PyTorch module."""
    def conv(y):
        out = lax.conv_general_dilated(
            y, w, window_strides=(1,), padding=[(2, 2)],
            dimension_numbers=("NCH", "OIH", "NCH"),
            precision=lax.Precision.HIGHEST)
        return out + b[None, :, None]

    h = jnp.maximum(conv(x), 0.0)
    r = jnp.maximum(conv(h) + x, 0.0)
    pooled = lax.reduce_window(
        r, -jnp.inf, lax.max,
        window_dimensions=(1, 1, 5), window_strides=(1, 1, 2), padding="VALID")
    return pooled


if __name__ == "__main__":
    C = 32                                   # module default num_neurons

    key = jax.random.PRNGKey(0)
    kx, kx2, kw, kb = jax.random.split(key, 4)

    fan_in = C * 5
    w = jax.random.uniform(kw, (C, C, 5), dtype=jnp.float32,
                           minval=-1.0, maxval=1.0) / jnp.sqrt(fan_in)
    b = jax.random.uniform(kb, (C,), dtype=jnp.float32,
                           minval=-1.0, maxval=1.0) / jnp.sqrt(fan_in)

    # config A: default bf16 MXU operands, single fused step (or 2 on 2-TC parts)
    N, L = 2, 128
    x = jax.random.normal(kx, (N, C, L), dtype=jnp.float32)
    out = jax.block_until_ready(convolutional_block(x, w, b))
    ref = reference(x, w, b)
    assert out.shape == (N, C, (L - 5) // 2 + 1), out.shape
    assert jnp.allclose(out, ref, rtol=5e-2, atol=5e-2), float(
        jnp.max(jnp.abs(out - ref)))

    # config B: odd L, non-divisible batch (padding), multi-step grid, f32 escape hatch
    N2, L2 = 5, 61
    x2 = jax.random.normal(kx2, (N2, C, L2), dtype=jnp.float32)
    out2 = jax.block_until_ready(
        convolutional_block(x2, w, b, max_batch_per_step=2, mm_dtype=jnp.float32))
    ref2 = reference(x2, w, b)
    assert out2.shape == (N2, C, (L2 - 5) // 2 + 1), out2.shape
    assert jnp.allclose(out2, ref2, rtol=5e-2, atol=5e-2), float(
        jnp.max(jnp.abs(out2 - ref2)))

    print("KERNEL_OK")
</pallas_src>

<mosaic_0001>
module attributes {stable_mosaic.version = 11 : i64} {
  func.func @conv_block_kernel(%arg0: i32, %arg1: memref<1x32x272xf32, #tpu.memory_space<vmem>>, %arg2: memref<32x160xbf16, #tpu.memory_space<vmem>>, %arg3: memref<32x1xf32, #tpu.memory_space<vmem>>, %arg4: memref<1x268xf32, #tpu.memory_space<vmem>>, %arg5: memref<1x32x260xf32, #tpu.memory_space<vmem>>) attributes {dimension_semantics = [#tpu.dimension_semantics<parallel>], iteration_bounds = array<i64: 1>, scalar_prefetch = 0 : i64, scratch_operands = 0 : i64, tpu.core_type = #tpu.core_type<tc>, window_params = [{transform_indices = @transform_0, window_bounds = array<i64: 1, 32, 272>}, {pipeline_mode = #tpu.pipeline_mode<synchronous>, transform_indices = @transform_1, window_bounds = array<i64: 32, 160>}, {pipeline_mode = #tpu.pipeline_mode<synchronous>, transform_indices = @transform_2, window_bounds = array<i64: 32, 1>}, {pipeline_mode = #tpu.pipeline_mode<synchronous>, transform_indices = @transform_3, window_bounds = array<i64: 1, 268>}, {transform_indices = @transform_4, window_bounds = array<i64: 1, 32, 260>}]} {
    %c0 = arith.constant 0 : index
    %c0_0 = arith.constant 0 : index
    %c0_1 = arith.constant 0 : index
    %0 = vector.load %arg1[%c0, %c0_0, %c0_1] : memref<1x32x272xf32, #tpu.memory_space<vmem>>, vector<1x32x272xf32>
    %1 = vector.shape_cast %0 : vector<1x32x272xf32> to vector<32x272xf32>
    %c0_2 = arith.constant 0 : index
    %c0_3 = arith.constant 0 : index
    %2 = vector.load %arg2[%c0_2, %c0_3] : memref<32x160xbf16, #tpu.memory_space<vmem>>, vector<32x160xbf16>
    %c0_4 = arith.constant 0 : index
    %c0_5 = arith.constant 0 : index
    %3 = vector.load %arg3[%c0_4, %c0_5] : memref<32x1xf32, #tpu.memory_space<vmem>>, vector<32x1xf32>
    %c0_6 = arith.constant 0 : index
    %c0_7 = arith.constant 0 : index
    %4 = vector.load %arg4[%c0_6, %c0_7] : memref<1x268xf32, #tpu.memory_space<vmem>>, vector<1x268xf32>
    %5 = arith.truncf %1 : vector<32x272xf32> to vector<32x272xbf16>
    %6 = vector.extract_strided_slice %5 {offsets = [0, 0], sizes = [32, 268], strides = [1, 1]} : vector<32x272xbf16> to vector<32x268xbf16>
    %7 = vector.extract_strided_slice %5 {offsets = [0, 1], sizes = [32, 268], strides = [1, 1]} : vector<32x272xbf16> to vector<32x268xbf16>
    %8 = vector.extract_strided_slice %5 {offsets = [0, 2], sizes = [32, 268], strides = [1, 1]} : vector<32x272xbf16> to vector<32x268xbf16>
    %9 = vector.extract_strided_slice %5 {offsets = [0, 3], sizes = [32, 268], strides = [1, 1]} : vector<32x272xbf16> to vector<32x268xbf16>
    %10 = vector.extract_strided_slice %5 {offsets = [0, 4], sizes = [32, 268], strides = [1, 1]} : vector<32x272xbf16> to vector<32x268xbf16>
    %11 = tpu.concatenate %6, %7, %8, %9, %10 in 0 : vector<32x268xbf16>, vector<32x268xbf16>, vector<32x268xbf16>, vector<32x268xbf16>, vector<32x268xbf16> -> vector<160x268xbf16>
    %cst = arith.constant dense<0.000000e+00> : vector<32x268xf32>
    %12 = tpu.matmul %2, %11, %cst {dimension_numbers = #tpu.dot_dimension_numbers<[1], [0], [0], [1], [0, 0, 1, 1], [], []>} : vector<32x160xbf16>, vector<160x268xbf16>, vector<32x268xf32> -> vector<32x268xf32>
    %13 = vector.broadcast %3 : vector<32x1xf32> to vector<32x268xf32>
    %14 = arith.addf %12, %13 : vector<32x268xf32>
    %cst_8 = arith.constant 0.000000e+00 : f32
    %15 = vector.broadcast %cst_8 : f32 to vector<32x268xf32>
    %16 = arith.maximumf %14, %15 : vector<32x268xf32>
    %17 = vector.broadcast %4 : vector<1x268xf32> to vector<32x268xf32>
    %18 = arith.mulf %16, %17 : vector<32x268xf32>
    %19 = arith.truncf %18 : vector<32x268xf32> to vector<32x268xbf16>
    %20 = vector.extract_strided_slice %19 {offsets = [0, 0], sizes = [32, 264], strides = [1, 1]} : vector<32x268xbf16> to vector<32x264xbf16>
    %21 = vector.extract_strided_slice %19 {offsets = [0, 1], sizes = [32, 264], strides = [1, 1]} : vector<32x268xbf16> to vector<32x264xbf16>
    %22 = vector.extract_strided_slice %19 {offsets = [0, 2], sizes = [32, 264], strides = [1, 1]} : vector<32x268xbf16> to vector<32x264xbf16>
    %23 = vector.extract_strided_slice %19 {offsets = [0, 3], sizes = [32, 264], strides = [1, 1]} : vector<32x268xbf16> to vector<32x264xbf16>
    %24 = vector.extract_strided_slice %19 {offsets = [0, 4], sizes = [32, 264], strides = [1, 1]} : vector<32x268xbf16> to vector<32x264xbf16>
    %25 = tpu.concatenate %20, %21, %22, %23, %24 in 0 : vector<32x264xbf16>, vector<32x264xbf16>, vector<32x264xbf16>, vector<32x264xbf16>, vector<32x264xbf16> -> vector<160x264xbf16>
    %cst_9 = arith.constant dense<0.000000e+00> : vector<32x264xf32>
    %26 = tpu.matmul %2, %25, %cst_9 {dimension_numbers = #tpu.dot_dimension_numbers<[1], [0], [0], [1], [0, 0, 1, 1], [], []>} : vector<32x160xbf16>, vector<160x264xbf16>, vector<32x264xf32> -> vector<32x264xf32>
    %27 = vector.broadcast %3 : vector<32x1xf32> to vector<32x264xf32>
    %28 = arith.addf %26, %27 : vector<32x264xf32>
    %29 = vector.extract_strided_slice %1 {offsets = [0, 4], sizes = [32, 264], strides = [1, 1]} : vector<32x272xf32> to vector<32x264xf32>
    %30 = arith.addf %28, %29 : vector<32x264xf32>
    %cst_10 = arith.constant 0.000000e+00 : f32
    %31 = vector.broadcast %cst_10 : f32 to vector<32x264xf32>
    %32 = arith.maximumf %30, %31 : vector<32x264xf32>
    %33 = vector.extract_strided_slice %32 {offsets = [0, 0], sizes = [32, 260], strides = [1, 1]} : vector<32x264xf32> to vector<32x260xf32>
    %34 = vector.extract_strided_slice %32 {offsets = [0, 1], sizes = [32, 260], strides = [1, 1]} : vector<32x264xf32> to vector<32x260xf32>
    %35 = arith.maximumf %33, %34 : vector<32x260xf32>
    %36 = vector.extract_strided_slice %32 {offsets = [0, 2], sizes = [32, 260], strides = [1, 1]} : vector<32x264xf32> to vector<32x260xf32>
    %37 = arith.maximumf %35, %36 : vector<32x260xf32>
    %38 = vector.extract_strided_slice %32 {offsets = [0, 3], sizes = [32, 260], strides = [1, 1]} : vector<32x264xf32> to vector<32x260xf32>
    %39 = arith.maximumf %37, %38 : vector<32x260xf32>
    %40 = vector.extract_strided_slice %32 {offsets = [0, 4], sizes = [32, 260], strides = [1, 1]} : vector<32x264xf32> to vector<32x260xf32>
    %41 = arith.maximumf %39, %40 : vector<32x260xf32>
    %c0_11 = arith.constant 0 : index
    %c0_12 = arith.constant 0 : index
    %c0_13 = arith.constant 0 : index
    %42 = vector.load %arg5[%c0_11, %c0_12, %c0_13] : memref<1x32x260xf32, #tpu.memory_space<vmem>>, vector<1x32x260xf32>
    %43 = vector.shape_cast %42 : vector<1x32x260xf32> to vector<32x260xf32>
    %44 = vector.shape_cast %41 : vector<32x260xf32> to vector<1x32x260xf32>
    tpu.vector_store %arg5[%c0_11, %c0_12, %c0_13], %44 {strides = array<i32>} : memref<1x32x260xf32, #tpu.memory_space<vmem>>, vector<1x32x260xf32>,
    return
  }
  func.func @transform_0(%arg0: i32) -> (i32, i32, i32) {
    %c0_i32 = arith.constant 0 : i32
    %c0_i32_0 = arith.constant 0 : i32
    %c0_i32_1 = arith.constant 0 : i32
    return %arg0, %c0_i32, %c0_i32_0 : i32, i32, i32
  }
  func.func @transform_1(%arg0: i32) -> (i32, i32) {
    %c0_i32 = arith.constant 0 : i32
    %c0_i32_0 = arith.constant 0 : i32
    %c0_i32_1 = arith.constant 0 : i32
    return %c0_i32, %c0_i32_0 : i32, i32
  }
  func.func @transform_2(%arg0: i32) -> (i32, i32) {
    %c0_i32 = arith.constant 0 : i32
    %c0_i32_0 = arith.constant 0 : i32
    %c0_i32_1 = arith.constant 0 : i32
    return %c0_i32, %c0_i32_0 : i32, i32
  }
  func.func @transform_3(%arg0: i32) -> (i32, i32) {
    %c0_i32 = arith.constant 0 : i32
    %c0_i32_0 = arith.constant 0 : i32
    %c0_i32_1 = arith.constant 0 : i32
    return %c0_i32, %c0_i32_0 : i32, i32
  }
  func.func @transform_4(%arg0: i32) -> (i32, i32, i32) {
    %c0_i32 = arith.constant 0 : i32
    %c0_i32_0 = arith.constant 0 : i32
    %c0_i32_1 = arith.constant 0 : i32
    return %arg0, %c0_i32, %c0_i32_0 : i32, i32, i32
  }
}

</mosaic_0001>

<llo_original>
// kernel: convolutional_block.1
$region0: #{convolutional_block.1}
  #allocation0 [shape = 'u32[]', space=smem, size = 0x4, offset = 0x4, fixed_abs, tag = 'smem constant byte address 0x4 - core index']
  #allocation1 [shape = 'u32[144,128]{1,0:T(1,128)}', space=vmem, size = 0x12000, scoped, tag = 'internal scratch']
  %s0 = inlined_call_operand.vmem [shape: f32[1,32,272], index: 0, kind: input, shape index: {}]
  %s1 = inlined_call_operand.vmem [shape: bf16[32,160], index: 1, kind: input, shape index: {}]
  %s2 = inlined_call_operand.vmem [shape: f32[32,1], index: 2, kind: input, shape index: {}]
  %s3 = inlined_call_operand.vmem [shape: f32[1,268], index: 3, kind: input, shape index: {}]
  %s4 = inlined_call_operand.vmem [shape: f32[1,32,260], index: 4, kind: output, shape index: {}]
  %s5 = sld [smem:[#allocation0]]
  $region26: #{convolutional_block.1} parent=0
    _
  %s7 = ssub.s32 1, %s5
  %s8 = scalar_select 0, %s7, %s5
  // Predicated region
  $region2: #{convolutional_block.1} parent=0 // pred_check
    _
  $region3: #{convolutional_block.1} parent=0 // pred_check_branch
    %10 = sbr.rel (0) target = $region5
  $region4: #{convolutional_block.1} parent=0 // pred_region
    _
  $region5: #{convolutional_block.1} parent=0 // pred_fallthru
    _
  // Predicated region
  $region6: #{convolutional_block.1} parent=0 // pred_check
    _
  $region7: #{convolutional_block.1} parent=0 // pred_check_branch
    %12 = sbr.rel (0) target = $region9
  $region8: #{convolutional_block.1} parent=0 // pred_region
    _
  $region9: #{convolutional_block.1} parent=0 // pred_fallthru
    _
  // Predicated region
  $region10: #{convolutional_block.1} parent=0 // pred_check
    _
  $region11: #{convolutional_block.1} parent=0 // pred_check_branch
    %14 = sbr.rel (0) target = $region13
  $region12: #{convolutional_block.1} parent=0 // pred_region
    _
  $region13: #{convolutional_block.1} parent=0 // pred_fallthru
    _
  // Predicated region
  $region14: #{convolutional_block.1} parent=0 // pred_check
    _
  $region15: #{convolutional_block.1} parent=0 // pred_check_branch
    %16 = sbr.rel (0) target = $region17
  $region16: #{convolutional_block.1} parent=0 // pred_region
    _
  $region17: #{convolutional_block.1} parent=0 // pred_fallthru
    _
  %v18 = vld [vmem:[%s0] sm:$0xff]
  %v19 = vld [vmem:[%s0 + $0x8] sm:$0xff]
  %v20 = vld [vmem:[%s0 + $0x10] sm:$0xff]
  %v21 = vld [vmem:[%s0 + $0x18] sm:$0xff]
  %v22 = vld [vmem:[%s0 + $0x20] sm:$0xff]
  %v23 = vld [vmem:[%s0 + $0x28] sm:$0xff]
  %v24 = vld [vmem:[%s0 + $0x30] sm:$0xff]
  %v25 = vld [vmem:[%s0 + $0x38] sm:$0xff]
  %v26 = vld [vmem:[%s0 + $0x40] sm:$0xff]
  %v27 = vld [vmem:[%s0 + $0x48] sm:$0xff]
  %v28 = vld [vmem:[%s0 + $0x50] sm:$0xff]
  %v29 = vld [vmem:[%s0 + $0x58] sm:$0xff]
  %v30 = vld [vmem:[%s1] sm:$0xff]
  %v31 = vld [vmem:[%s1 + $0x8] sm:$0xff]
  %v32 = vld [vmem:[%s1 + $0x10] sm:$0xff]
  %v33 = vld [vmem:[%s1 + $0x18] sm:$0xff]
  %v34 = vld [vmem:[%s2] sm:$0xff]
  %v35 = vld [vmem:[%s2 + $0x8] sm:$0xff]
  %v36 = vld [vmem:[%s2 + $0x10] sm:$0xff]
  %v37 = vld [vmem:[%s2 + $0x18] sm:$0xff]
  %v38 = vld [vmem:[%s3] sm:$0x7]
  %v39 = vpack.c.bf16 %v21, %v18
  %v40 = vpack.c.bf16 %v22, %v19
  %v41 = vpack.c.bf16 %v23, %v20
  %v42 = vpack.c.bf16 %v27, %v24
  %v43 = vpack.c.bf16 %v28, %v25
  %v44 = vpack.c.bf16 %v29, %v26
  %51 = vrot.lane.b32.xlu0 %v39, 127
  %v52 = vpop.permute.xlu0 %51
  %53 = vrot.lane.b32.xlu0 %v40, 127
  %v54 = vpop.permute.xlu0 %53
  %55 = vrot.lane.b32.xlu0 %v41, 127
  %v56 = vpop.permute.xlu0 %55
  %57 = vrot.lane.b32.xlu0 %v42, 127
  %v58 = vpop.permute.xlu0 %57
  %59 = vrot.lane.b32.xlu0 %v43, 127
  %v60 = vpop.permute.xlu0 %59
  %61 = vrot.lane.b32.xlu0 %v44, 127
  %v62 = vpop.permute.xlu0 %61
  %vm63 = vcmask 1039360
  %v64 = vsel %vm63, %v52, %v54
  %v65 = vsel %vm63, %v54, %v56
  %v66 = vsel %vm63, %v58, %v60
  %v67 = vsel %vm63, %v60, %v62
  %74 = vrot.lane.b32.xlu0 %v39, 126
  %v75 = vpop.permute.xlu0 %74
  %76 = vrot.lane.b32.xlu0 %v40, 126
  %v77 = vpop.permute.xlu0 %76
  %78 = vrot.lane.b32.xlu0 %v41, 126
  %v79 = vpop.permute.xlu0 %78
  %80 = vrot.lane.b32.xlu0 %v42, 126
  %v81 = vpop.permute.xlu0 %80
  %82 = vrot.lane.b32.xlu0 %v43, 126
  %v83 = vpop.permute.xlu0 %82
  %84 = vrot.lane.b32.xlu0 %v44, 126
  %v85 = vpop.permute.xlu0 %84
  %vm86 = vcmask 1031168
  %v87 = vsel %vm86, %v75, %v77
  %v88 = vsel %vm86, %v77, %v79
  %v89 = vsel %vm86, %v81, %v83
  %v90 = vsel %vm86, %v83, %v85
  %97 = vrot.lane.b32.xlu0 %v39, 125
  %v98 = vpop.permute.xlu0 %97
  %99 = vrot.lane.b32.xlu0 %v40, 125
  %v100 = vpop.permute.xlu0 %99
  %101 = vrot.lane.b32.xlu0 %v41, 125
  %v102 = vpop.permute.xlu0 %101
  %103 = vrot.lane.b32.xlu0 %v42, 125
  %v104 = vpop.permute.xlu0 %103
  %105 = vrot.lane.b32.xlu0 %v43, 125
  %v106 = vpop.permute.xlu0 %105
  %107 = vrot.lane.b32.xlu0 %v44, 125
  %v108 = vpop.permute.xlu0 %107
  %vm109 = vcmask 1022976
  %v110 = vsel %vm109, %v98, %v100
  %v111 = vsel %vm109, %v100, %v102
  %v112 = vsel %vm109, %v104, %v106
  %v113 = vsel %vm109, %v106, %v108
  %120 = vrot.lane.b32.xlu0 %v39, 124
  %v121 = vpop.permute.xlu0 %120
  %122 = vrot.lane.b32.xlu0 %v40, 124
  %v123 = vpop.permute.xlu0 %122
  %124 = vrot.lane.b32.xlu0 %v41, 124
  %v125 = vpop.permute.xlu0 %124
  %126 = vrot.lane.b32.xlu0 %v42, 124
  %v127 = vpop.permute.xlu0 %126
  %128 = vrot.lane.b32.xlu0 %v43, 124
  %v129 = vpop.permute.xlu0 %128
  %130 = vrot.lane.b32.xlu0 %v44, 124
  %v131 = vpop.permute.xlu0 %130
  %vm132 = vcmask 1014784
  %v133 = vsel %vm132, %v121, %v123
  %v134 = vsel %vm132, %v123, %v125
  %v135 = vsel %vm132, %v127, %v129
  %v136 = vsel %vm132, %v129, %v131
  %144 = vset.pattern.permute.xlu0 0
  %145 = vperm.xlu0 %144, %v34
  %v146 = vpop.permute.xlu0 %145
  %149 = vset.pattern.permute.xlu0 0
  %150 = vperm.xlu0 %149, %v35
  %v151 = vpop.permute.xlu0 %150
  %154 = vset.pattern.permute.xlu0 0
  %155 = vperm.xlu0 %154, %v36
  %v156 = vpop.permute.xlu0 %155
  %159 = vset.pattern.permute.xlu0 0
  %160 = vperm.xlu0 %159, %v37
  %v161 = vpop.permute.xlu0 %160
  %v167 = vunpack.c.l.b16 %v30
  %v168 = vunpack.c.h.b16 %v30
  %v169 = vunpack.c.l.b16 %v31
  %v170 = vunpack.c.h.b16 %v31
  %v171 = vunpack.c.l.b16 %v32
  %v172 = vunpack.c.h.b16 %v32
  %v173 = vunpack.c.l.b16 %v33
  %v174 = vunpack.c.h.b16 %v33
  %v175 = vpack.c.b16 %v169, %v167
  %v176 = vpack.c.b16 %v170, %v168
  %v177 = vpack.c.b16 %v173, %v171
  %v178 = vpack.c.b16 %v174, %v172
  %vm181 = vcmask 261120
  %v183 = vsel %vm181, %v176, 0
  %v186 = vsel %vm181, %v178, 0
  %188 = vmatprep.subr.bf16.mxu0 %v40
  %189 = vmatpush1.bf16.msra.mxu0 %v39
  %190 = vmatprep.subr.bf16.mxu0 %v43
  %191 = vmatpush1.bf16.msra.mxu0 %v42
  %192 = vmatprep.subr.bf16.mxu0 %v65
  %193 = vmatpush1.bf16.msra.mxu0 %v64
  %194 = vmatprep.subr.bf16.mxu0 %v67
  %195 = vmatpush1.bf16.msra.mxu0 %v66
  %196 = vmatprep.subr.bf16.mxu0 %v88
  %197 = vmatpush1.bf16.msra.mxu0 %v87
  %198 = vmatprep.subr.bf16.mxu0 %v90
  %199 = vmatpush1.bf16.msra.mxu0 %v89
  %200 = vmatprep.subr.bf16.mxu0 %v111
  %201 = vmatpush1.bf16.msra.mxu0 %v110
  %202 = vmatprep.subr.bf16.mxu0 %v113
  %203 = vmatpush1.bf16.msra.mxu0 %v112
  %204 = vmatprep.subr.bf16.mxu0 %v134
  %205 = vmatpush1.bf16.msra.mxu0 %v133
  %206 = vmatprep.subr.bf16.mxu0 %v136
  %207 = vmatpush1.bf16.msra.mxu0 %v135
  %208 = vmatprep.subr.bf16.mxu0 0
  %209 = vmatpush1.bf16.msra.mxu0 0
  %210 = vmatprep.subr.bf16.mxu0 0
  %211 = vmatpush1.bf16.msra.mxu0 0
  %212 = vmatprep.subr.bf16.mxu0 0
  %213 = vmatpush1.bf16.msra.mxu0 0
  %214 = vmatprep.subr.bf16.mxu0 0
  %215 = vmatpush1.bf16.msra.mxu0 0
  %216 = vmatprep.subr.bf16.mxu0 0
  %217 = vmatpush1.bf16.msra.mxu0 0
  %218 = vmatprep.subr.bf16.mxu0 0
  %219 = vmatpush1.bf16.msra.mxu0 0
  %220 = vmatprep.mubr.bf16.mxu0 %v183
  %221 = vmatmul.mubr.bf16.gmra.mrb[0].mxu0 %v175
  %v222 = vpop.f32.mrb[0].mxu0
  %v223 = vadd.f32 %v146, %v222
  %v224 = vpop.f32.mrb[0].mxu0
  %v225 = vadd.f32 %v146, %v224
  %v226 = vpop.f32.mrb[0].mxu0
  %v227 = vadd.f32 %v151, %v226
  %v228 = vpop.f32.mrb[0].mxu0
  %v229 = vadd.f32 %v151, %v228
  %230 = vmatprep.mubr.bf16.mxu0 %v186
  %231 = vmatmul.mubr.bf16.gmra.mrb[0].mxu0 %v177
  %v232 = vpop.f32.mrb[0].mxu0
  %v233 = vadd.f32 %v156, %v232
  %v234 = vpop.f32.mrb[0].mxu0
  %v235 = vadd.f32 %v156, %v234
  %v236 = vpop.f32.mrb[0].mxu0
  %v237 = vadd.f32 %v161, %v236
  %v238 = vpop.f32.mrb[0].mxu0
  %v239 = vadd.f32 %v161, %v238
  %240 = vdwg.mxu0
  %241 = vmatprep.subr.bf16.mxu0 0
  %242 = vmatpush1.bf16.msra.mxu0 %v41
  %243 = vmatprep.subr.bf16.mxu0 0
  %244 = vmatpush1.bf16.msra.mxu0 %v44
  %245 = vmatprep.subr.bf16.mxu0 0
  %246 = vmatpush1.bf16.msra.mxu0 %v56
  %247 = vmatprep.subr.bf16.mxu0 0
  %248 = vmatpush1.bf16.msra.mxu0 %v62
  %249 = vmatprep.subr.bf16.mxu0 0
  %250 = vmatpush1.bf16.msra.mxu0 %v79
  %251 = vmatprep.subr.bf16.mxu0 0
  %252 = vmatpush1.bf16.msra.mxu0 %v85
  %253 = vmatprep.subr.bf16.mxu0 0
  %254 = vmatpush1.bf16.msra.mxu0 %v102
  %255 = vmatprep.subr.bf16.mxu0 0
  %256 = vmatpush1.bf16.msra.mxu0 %v108
  %257 = vmatprep.subr.bf16.mxu0 0
  %258 = vmatpush1.bf16.msra.mxu0 %v125
  %259 = vmatprep.subr.bf16.mxu0 0
  %260 = vmatpush1.bf16.msra.mxu0 %v131
  %261 = vmatprep.subr.bf16.mxu0 0
  %262 = vmatpush1.bf16.msra.mxu0 0
  %263 = vmatprep.subr.bf16.mxu0 0
  %264 = vmatpush1.bf16.msra.mxu0 0
  %265 = vmatprep.subr.bf16.mxu0 0
  %266 = vmatpush1.bf16.msra.mxu0 0
  %267 = vmatprep.subr.bf16.mxu0 0
  %268 = vmatpush1.bf16.msra.mxu0 0
  %269 = vmatprep.subr.bf16.mxu0 0
  %270 = vmatpush1.bf16.msra.mxu0 0
  %271 = vmatprep.subr.bf16.mxu0 0
  %272 = vmatpush1.bf16.msra.mxu0 0
  %273 = vmatprep.mubr.bf16.mxu0 %v183
  %274 = vmatmul.mubr.bf16.gmra.mrb[0].mxu0 %v175
  %v275 = vpop.f32.mrb[0].mxu0
  %v276 = vadd.f32 %v146, %v275
  %v277 = vpop.f32.mrb[0].mxu0
  %v278 = vpop.f32.mrb[0].mxu0
  %v279 = vadd.f32 %v151, %v278
  %v280 = vpop.f32.mrb[0].mxu0
  %281 = vmatprep.mubr.bf16.mxu0 %v186
  %282 = vmatmul.mubr.bf16.gmra.mrb[0].mxu0 %v177
  %v283 = vpop.f32.mrb[0].mxu0
  %v284 = vadd.f32 %v156, %v283
  %v285 = vpop.f32.mrb[0].mxu0
  %v286 = vpop.f32.mrb[0].mxu0
  %v287 = vadd.f32 %v161, %v286
  %v288 = vpop.f32.mrb[0].mxu0
  %289 = vdwg.mxu0
  %v290 = vmax.f32 %v223, 0.0
  %v291 = vmax.f32 %v225, 0.0
  %v292 = vmax.f32 %v276, 0.0
  %v293 = vmax.f32 %v227, 0.0
  %v294 = vmax.f32 %v229, 0.0
  %v295 = vmax.f32 %v279, 0.0
  %v296 = vmax.f32 %v233, 0.0
  %v297 = vmax.f32 %v235, 0.0
  %v298 = vmax.f32 %v284, 0.0
  %v299 = vmax.f32 %v237, 0.0
  %v300 = vmax.f32 %v239, 0.0
  %v301 = vmax.f32 %v287, 0.0
  %v303 = vlaneseq
  %v304 = vshrl.u32 %v303, 7
  %v305 = vsub.s32 0, %v304
  %v306 = vrot.slane %v38, %v305
  %v307 = vlaneseq
  %v308 = vshrl.u32 %v307, 7
  %v309 = vsub.s32 1, %v308
  %v310 = vrot.slane %v38, %v309
  %v311 = vlaneseq
  %v312 = vshrl.u32 %v311, 7
  %v313 = vsub.s32 2, %v312
  %v314 = vrot.slane %v38, %v313
  %v318 = vmul.f32 %v290, %v306
  %v319 = vmul.f32 %v291, %v310
  %v320 = vmul.f32 %v292, %v314
  %v321 = vmul.f32 %v293, %v306
  %v322 = vmul.f32 %v294, %v310
  %v323 = vmul.f32 %v295, %v314
  %v324 = vmul.f32 %v296, %v306
  %v325 = vmul.f32 %v297, %v310
  %v326 = vmul.f32 %v298, %v314
  %v327 = vmul.f32 %v299, %v306
  %v328 = vmul.f32 %v300, %v310
  %v329 = vmul.f32 %v301, %v314
  %v330 = vpack.c.bf16 %v321, %v318
  %v331 = vpack.c.bf16 %v322, %v319
  %v332 = vpack.c.bf16 %v323, %v320
  %v333 = vpack.c.bf16 %v327, %v324
  %v334 = vpack.c.bf16 %v328, %v325
  %v335 = vpack.c.bf16 %v329, %v326
  %342 = vrot.lane.b32.xlu0 %v330, 127
  %v343 = vpop.permute.xlu0 %342
  %344 = vrot.lane.b32.xlu0 %v331, 127
  %v345 = vpop.permute.xlu0 %344
  %346 = vrot.lane.b32.xlu0 %v332, 127
  %v347 = vpop.permute.xlu0 %346
  %348 = vrot.lane.b32.xlu0 %v333, 127
  %v349 = vpop.permute.xlu0 %348
  %350 = vrot.lane.b32.xlu0 %v334, 127
  %v351 = vpop.permute.xlu0 %350
  %352 = vrot.lane.b32.xlu0 %v335, 127
  %v353 = vpop.permute.xlu0 %352
  %v354 = vsel %vm63, %v343, %v345
  %v355 = vsel %vm63, %v345, %v347
  %v356 = vsel %vm63, %v349, %v351
  %v357 = vsel %vm63, %v351, %v353
  %364 = vrot.lane.b32.xlu0 %v330, 126
  %v365 = vpop.permute.xlu0 %364
  %366 = vrot.lane.b32.xlu0 %v331, 126
  %v367 = vpop.permute.xlu0 %366
  %368 = vrot.lane.b32.xlu0 %v332, 126
  %v369 = vpop.permute.xlu0 %368
  %370 = vrot.lane.b32.xlu0 %v333, 126
  %v371 = vpop.permute.xlu0 %370
  %372 = vrot.lane.b32.xlu0 %v334, 126
  %v373 = vpop.permute.xlu0 %372
  %374 = vrot.lane.b32.xlu0 %v335, 126
  %v375 = vpop.permute.xlu0 %374
  %v376 = vsel %vm86, %v365, %v367
  %v377 = vsel %vm86, %v367, %v369
  %v378 = vsel %vm86, %v371, %v373
  %v379 = vsel %vm86, %v373, %v375
  %386 = vrot.lane.b32.xlu0 %v330, 125
  %v387 = vpop.permute.xlu0 %386
  %388 = vrot.lane.b32.xlu0 %v331, 125
  %v389 = vpop.permute.xlu0 %388
  %390 = vrot.lane.b32.xlu0 %v332, 125
  %v391 = vpop.permute.xlu0 %390
  %392 = vrot.lane.b32.xlu0 %v333, 125
  %v393 = vpop.permute.xlu0 %392
  %394 = vrot.lane.b32.xlu0 %v334, 125
  %v395 = vpop.permute.xlu0 %394
  %396 = vrot.lane.b32.xlu0 %v335, 125
  %v397 = vpop.permute.xlu0 %396
  %v398 = vsel %vm109, %v387, %v389
  %v399 = vsel %vm109, %v389, %v391
  %v400 = vsel %vm109, %v393, %v395
  %v401 = vsel %vm109, %v395, %v397
  %408 = vrot.lane.b32.xlu0 %v330, 124
  %v409 = vpop.permute.xlu0 %408
  %410 = vrot.lane.b32.xlu0 %v331, 124
  %v411 = vpop.permute.xlu0 %410
  %412 = vrot.lane.b32.xlu0 %v332, 124
  %v413 = vpop.permute.xlu0 %412
  %414 = vrot.lane.b32.xlu0 %v333, 124
  %v415 = vpop.permute.xlu0 %414
  %416 = vrot.lane.b32.xlu0 %v334, 124
  %v417 = vpop.permute.xlu0 %416
  %418 = vrot.lane.b32.xlu0 %v335, 124
  %v419 = vpop.permute.xlu0 %418
  %v420 = vsel %vm132, %v409, %v411
  %v421 = vsel %vm132, %v411, %v413
  %v422 = vsel %vm132, %v415, %v417
  %v423 = vsel %vm132, %v417, %v419
  %430 = vmatprep.subr.bf16.mxu0 %v331
  %431 = vmatpush1.bf16.msra.mxu0 %v330
  %432 = vmatprep.subr.bf16.mxu0 %v334
  %433 = vmatpush1.bf16.msra.mxu0 %v333
  %434 = vmatprep.subr.bf16.mxu0 %v355
  %435 = vmatpush1.bf16.msra.mxu0 %v354
  %436 = vmatprep.subr.bf16.mxu0 %v357
  %437 = vmatpush1.bf16.msra.mxu0 %v356
  %438 = vmatprep.subr.bf16.mxu0 %v377
  %439 = vmatpush1.bf16.msra.mxu0 %v376
  %440 = vmatprep.subr.bf16.mxu0 %v379
  %441 = vmatpush1.bf16.msra.mxu0 %v378
  %442 = vmatprep.subr.bf16.mxu0 %v399
  %443 = vmatpush1.bf16.msra.mxu0 %v398
  %444 = vmatprep.subr.bf16.mxu0 %v401
  %445 = vmatpush1.bf16.msra.mxu0 %v400
  %446 = vmatprep.subr.bf16.mxu0 %v421
  %447 = vmatpush1.bf16.msra.mxu0 %v420
  %448 = vmatprep.subr.bf16.mxu0 %v423
  %449 = vmatpush1.bf16.msra.mxu0 %v422
  %450 = vmatprep.subr.bf16.mxu0 0
  %451 = vmatpush1.bf16.msra.mxu0 0
  %452 = vmatprep.subr.bf16.mxu0 0
  %453 = vmatpush1.bf16.msra.mxu0 0
  %454 = vmatprep.subr.bf16.mxu0 0
  %455 = vmatpush1.bf16.msra.mxu0 0
  %456 = vmatprep.subr.bf16.mxu0 0
  %457 = vmatpush1.bf16.msra.mxu0 0
  %458 = vmatprep.subr.bf16.mxu0 0
  %459 = vmatpush1.bf16.msra.mxu0 0
  %460 = vmatprep.subr.bf16.mxu0 0
  %461 = vmatpush1.bf16.msra.mxu0 0
  %462 = vmatprep.mubr.bf16.mxu0 %v183
  %463 = vmatmul.mubr.bf16.gmra.mrb[0].mxu0 %v175
  %v464 = vpop.f32.mrb[0].mxu0
  %v465 = vadd.f32 %v146, %v464
  %v466 = vpop.f32.mrb[0].mxu0
  %v467 = vadd.f32 %v146, %v466
  %v468 = vpop.f32.mrb[0].mxu0
  %v469 = vadd.f32 %v151, %v468
  %v470 = vpop.f32.mrb[0].mxu0
  %v471 = vadd.f32 %v151, %v470
  %472 = vmatprep.mubr.bf16.mxu0 %v186
  %473 = vmatmul.mubr.bf16.gmra.mrb[0].mxu0 %v177
  %v474 = vpop.f32.mrb[0].mxu0
  %v475 = vadd.f32 %v156, %v474
  %v476 = vpop.f32.mrb[0].mxu0
  %v477 = vadd.f32 %v156, %v476
  %v478 = vpop.f32.mrb[0].mxu0
  %v479 = vadd.f32 %v161, %v478
  %v480 = vpop.f32.mrb[0].mxu0
  %v481 = vadd.f32 %v161, %v480
  %482 = vdwg.mxu0
  %483 = vmatprep.subr.bf16.mxu0 0
  %484 = vmatpush1.bf16.msra.mxu0 %v332
  %485 = vmatprep.subr.bf16.mxu0 0
  %486 = vmatpush1.bf16.msra.mxu0 %v335
  %487 = vmatprep.subr.bf16.mxu0 0
  %488 = vmatpush1.bf16.msra.mxu0 %v347
  %489 = vmatprep.subr.bf16.mxu0 0
  %490 = vmatpush1.bf16.msra.mxu0 %v353
  %491 = vmatprep.subr.bf16.mxu0 0
  %492 = vmatpush1.bf16.msra.mxu0 %v369
  %493 = vmatprep.subr.bf16.mxu0 0
  %494 = vmatpush1.bf16.msra.mxu0 %v375
  %495 = vmatprep.subr.bf16.mxu0 0
  %496 = vmatpush1.bf16.msra.mxu0 %v391
  %497 = vmatprep.subr.bf16.mxu0 0
  %498 = vmatpush1.bf16.msra.mxu0 %v397
  %499 = vmatprep.subr.bf16.mxu0 0
  %500 = vmatpush1.bf16.msra.mxu0 %v413
  %501 = vmatprep.subr.bf16.mxu0 0
  %502 = vmatpush1.bf16.msra.mxu0 %v419
  %503 = vmatprep.subr.bf16.mxu0 0
  %504 = vmatpush1.bf16.msra.mxu0 0
  %505 = vmatprep.subr.bf16.mxu0 0
  %506 = vmatpush1.bf16.msra.mxu0 0
  %507 = vmatprep.subr.bf16.mxu0 0
  %508 = vmatpush1.bf16.msra.mxu0 0
  %509 = vmatprep.subr.bf16.mxu0 0
  %510 = vmatpush1.bf16.msra.mxu0 0
  %511 = vmatprep.subr.bf16.mxu0 0
  %512 = vmatpush1.bf16.msra.mxu0 0
  %513 = vmatprep.subr.bf16.mxu0 0
  %514 = vmatpush1.bf16.msra.mxu0 0
  %515 = vmatprep.mubr.bf16.mxu0 %v183
  %516 = vmatmul.mubr.bf16.gmra.mrb[0].mxu0 %v175
  %v517 = vpop.f32.mrb[0].mxu0
  %v518 = vadd.f32 %v146, %v517
  %v519 = vpop.f32.mrb[0].mxu0
  %v520 = vpop.f32.mrb[0].mxu0
  %v521 = vadd.f32 %v151, %v520
  %v522 = vpop.f32.mrb[0].mxu0
  %523 = vmatprep.mubr.bf16.mxu0 %v186
  %524 = vmatmul.mubr.bf16.gmra.mrb[0].mxu0 %v177
  %v525 = vpop.f32.mrb[0].mxu0
  %v526 = vadd.f32 %v156, %v525
  %v527 = vpop.f32.mrb[0].mxu0
  %v528 = vpop.f32.mrb[0].mxu0
  %v529 = vadd.f32 %v161, %v528
  %v530 = vpop.f32.mrb[0].mxu0
  %531 = vdwg.mxu0
  %544 = vrot.lane.b32.xlu0 %v18, 124
  %v545 = vpop.permute.xlu0 %544
  %546 = vrot.lane.b32.xlu0 %v19, 124
  %v547 = vpop.permute.xlu0 %546
  %548 = vrot.lane.b32.xlu0 %v20, 124
  %v549 = vpop.permute.xlu0 %548
  %550 = vrot.lane.b32.xlu0 %v21, 124
  %v551 = vpop.permute.xlu0 %550
  %552 = vrot.lane.b32.xlu0 %v22, 124
  %v553 = vpop.permute.xlu0 %552
  %554 = vrot.lane.b32.xlu0 %v23, 124
  %v555 = vpop.permute.xlu0 %554
  %556 = vrot.lane.b32.xlu0 %v24, 124
  %v557 = vpop.permute.xlu0 %556
  %558 = vrot.lane.b32.xlu0 %v25, 124
  %v559 = vpop.permute.xlu0 %558
  %560 = vrot.lane.b32.xlu0 %v26, 124
  %v561 = vpop.permute.xlu0 %560
  %562 = vrot.lane.b32.xlu0 %v27, 124
  %v563 = vpop.permute.xlu0 %562
  %564 = vrot.lane.b32.xlu0 %v28, 124
  %v565 = vpop.permute.xlu0 %564
  %566 = vrot.lane.b32.xlu0 %v29, 124
  %v567 = vpop.permute.xlu0 %566
  %vm568 = vcmask 1014784
  %v569 = vsel %vm568, %v545, %v547
  %v570 = vsel %vm568, %v547, %v549
  %v571 = vsel %vm568, %v551, %v553
  %v572 = vsel %vm568, %v553, %v555
  %v573 = vsel %vm568, %v557, %v559
  %v574 = vsel %vm568, %v559, %v561
  %v575 = vsel %vm568, %v563, %v565
  %v576 = vsel %vm568, %v565, %v567
  %v589 = vadd.f32 %v465, %v569
  %v590 = vadd.f32 %v467, %v570
  %v591 = vadd.f32 %v518, %v549
  %v592 = vadd.f32 %v469, %v571
  %v593 = vadd.f32 %v471, %v572
  %v594 = vadd.f32 %v521, %v555
  %v595 = vadd.f32 %v475, %v573
  %v596 = vadd.f32 %v477, %v574
  %v597 = vadd.f32 %v526, %v561
  %v598 = vadd.f32 %v479, %v575
  %v599 = vadd.f32 %v481, %v576
  %v600 = vadd.f32 %v529, %v567
  %v601 = vmax.f32 %v589, 0.0
  %v602 = vmax.f32 %v590, 0.0
  %v603 = vmax.f32 %v591, 0.0
  %v604 = vmax.f32 %v592, 0.0
  %v605 = vmax.f32 %v593, 0.0
  %v606 = vmax.f32 %v594, 0.0
  %v607 = vmax.f32 %v595, 0.0
  %v608 = vmax.f32 %v596, 0.0
  %v609 = vmax.f32 %v597, 0.0
  %v610 = vmax.f32 %v598, 0.0
  %v611 = vmax.f32 %v599, 0.0
  %v612 = vmax.f32 %v600, 0.0
  %625 = vrot.lane.b32.xlu0 %v601, 127
  %v626 = vpop.permute.xlu0 %625
  %627 = vrot.lane.b32.xlu0 %v602, 127
  %v628 = vpop.permute.xlu0 %627
  %629 = vrot.lane.b32.xlu0 %v603, 127
  %v630 = vpop.permute.xlu0 %629
  %631 = vrot.lane.b32.xlu0 %v604, 127
  %v632 = vpop.permute.xlu0 %631
  %633 = vrot.lane.b32.xlu0 %v605, 127
  %v634 = vpop.permute.xlu0 %633
  %635 = vrot.lane.b32.xlu0 %v606, 127
  %v636 = vpop.permute.xlu0 %635
  %637 = vrot.lane.b32.xlu0 %v607, 127
  %v638 = vpop.permute.xlu0 %637
  %639 = vrot.lane.b32.xlu0 %v608, 127
  %v640 = vpop.permute.xlu0 %639
  %641 = vrot.lane.b32.xlu0 %v609, 127
  %v642 = vpop.permute.xlu0 %641
  %643 = vrot.lane.b32.xlu0 %v610, 127
  %v644 = vpop.permute.xlu0 %643
  %645 = vrot.lane.b32.xlu0 %v611, 127
  %v646 = vpop.permute.xlu0 %645
  %647 = vrot.lane.b32.xlu0 %v612, 127
  %v648 = vpop.permute.xlu0 %647
  %vm649 = vcmask 1039360
  %v650 = vsel %vm649, %v626, %v628
  %v651 = vsel %vm649, %v628, %v630
  %v652 = vsel %vm649, %v632, %v634
  %v653 = vsel %vm649, %v634, %v636
  %v654 = vsel %vm649, %v638, %v640
  %v655 = vsel %vm649, %v640, %v642
  %v656 = vsel %vm649, %v644, %v646
  %v657 = vsel %vm649, %v646, %v648
  %v670 = vmax.f32 %v601, %v650
  %v671 = vmax.f32 %v602, %v651
  %v672 = vmax.f32 %v603, %v630
  %v673 = vmax.f32 %v604, %v652
  %v674 = vmax.f32 %v605, %v653
  %v675 = vmax.f32 %v606, %v636
  %v676 = vmax.f32 %v607, %v654
  %v677 = vmax.f32 %v608, %v655
  %v678 = vmax.f32 %v609, %v642
  %v679 = vmax.f32 %v610, %v656
  %v680 = vmax.f32 %v611, %v657
  %v681 = vmax.f32 %v612, %v648
  %682 = vrot.lane.b32.xlu0 %v601, 126
  %v683 = vpop.permute.xlu0 %682
  %684 = vrot.lane.b32.xlu0 %v602, 126
  %v685 = vpop.permute.xlu0 %684
  %686 = vrot.lane.b32.xlu0 %v603, 126
  %v687 = vpop.permute.xlu0 %686
  %688 = vrot.lane.b32.xlu0 %v604, 126
  %v689 = vpop.permute.xlu0 %688
  %690 = vrot.lane.b32.xlu0 %v605, 126
  %v691 = vpop.permute.xlu0 %690
  %692 = vrot.lane.b32.xlu0 %v606, 126
  %v693 = vpop.permute.xlu0 %692
  %694 = vrot.lane.b32.xlu0 %v607, 126
  %v695 = vpop.permute.xlu0 %694
  %696 = vrot.lane.b32.xlu0 %v608, 126
  %v697 = vpop.permute.xlu0 %696
  %698 = vrot.lane.b32.xlu0 %v609, 126
  %v699 = vpop.permute.xlu0 %698
  %700 = vrot.lane.b32.xlu0 %v610, 126
  %v701 = vpop.permute.xlu0 %700
  %702 = vrot.lane.b32.xlu0 %v611, 126
  %v703 = vpop.permute.xlu0 %702
  %704 = vrot.lane.b32.xlu0 %v612, 126
  %v705 = vpop.permute.xlu0 %704
  %vm706 = vcmask 1031168
  %v707 = vsel %vm706, %v683, %v685
  %v708 = vsel %vm706, %v685, %v687
  %v709 = vsel %vm706, %v689, %v691
  %v710 = vsel %vm706, %v691, %v693
  %v711 = vsel %vm706, %v695, %v697
  %v712 = vsel %vm706, %v697, %v699
  %v713 = vsel %vm706, %v701, %v703
  %v714 = vsel %vm706, %v703, %v705
  %v727 = vmax.f32 %v670, %v707
  %v728 = vmax.f32 %v671, %v708
  %v729 = vmax.f32 %v672, %v687
  %v730 = vmax.f32 %v673, %v709
  %v731 = vmax.f32 %v674, %v710
  %v732 = vmax.f32 %v675, %v693
  %v733 = vmax.f32 %v676, %v711
  %v734 = vmax.f32 %v677, %v712
  %v735 = vmax.f32 %v678, %v699
  %v736 = vmax.f32 %v679, %v713
  %v737 = vmax.f32 %v680, %v714
  %v738 = vmax.f32 %v681, %v705
  %739 = vrot.lane.b32.xlu0 %v601, 125
  %v740 = vpop.permute.xlu0 %739
  %741 = vrot.lane.b32.xlu0 %v602, 125
  %v742 = vpop.permute.xlu0 %741
  %743 = vrot.lane.b32.xlu0 %v603, 125
  %v744 = vpop.permute.xlu0 %743
  %745 = vrot.lane.b32.xlu0 %v604, 125
  %v746 = vpop.permute.xlu0 %745
  %747 = vrot.lane.b32.xlu0 %v605, 125
  %v748 = vpop.permute.xlu0 %747
  %749 = vrot.lane.b32.xlu0 %v606, 125
  %v750 = vpop.permute.xlu0 %749
  %751 = vrot.lane.b32.xlu0 %v607, 125
  %v752 = vpop.permute.xlu0 %751
  %753 = vrot.lane.b32.xlu0 %v608, 125
  %v754 = vpop.permute.xlu0 %753
  %755 = vrot.lane.b32.xlu0 %v609, 125
  %v756 = vpop.permute.xlu0 %755
  %757 = vrot.lane.b32.xlu0 %v610, 125
  %v758 = vpop.permute.xlu0 %757
  %759 = vrot.lane.b32.xlu0 %v611, 125
  %v760 = vpop.permute.xlu0 %759
  %761 = vrot.lane.b32.xlu0 %v612, 125
  %v762 = vpop.permute.xlu0 %761
  %vm763 = vcmask 1022976
  %v764 = vsel %vm763, %v740, %v742
  %v765 = vsel %vm763, %v742, %v744
  %v766 = vsel %vm763, %v746, %v748
  %v767 = vsel %vm763, %v748, %v750
  %v768 = vsel %vm763, %v752, %v754
  %v769 = vsel %vm763, %v754, %v756
  %v770 = vsel %vm763, %v758, %v760
  %v771 = vsel %vm763, %v760, %v762
  %v784 = vmax.f32 %v727, %v764
  %v785 = vmax.f32 %v728, %v765
  %v786 = vmax.f32 %v729, %v744
  %v787 = vmax.f32 %v730, %v766
  %v788 = vmax.f32 %v731, %v767
  %v789 = vmax.f32 %v732, %v750
  %v790 = vmax.f32 %v733, %v768
  %v791 = vmax.f32 %v734, %v769
  %v792 = vmax.f32 %v735, %v756
  %v793 = vmax.f32 %v736, %v770
  %v794 = vmax.f32 %v737, %v771
  %v795 = vmax.f32 %v738, %v762
  %796 = vrot.lane.b32.xlu0 %v601, 124
  %v797 = vpop.permute.xlu0 %796
  %798 = vrot.lane.b32.xlu0 %v602, 124
  %v799 = vpop.permute.xlu0 %798
  %800 = vrot.lane.b32.xlu0 %v603, 124
  %v801 = vpop.permute.xlu0 %800
  %802 = vrot.lane.b32.xlu0 %v604, 124
  %v803 = vpop.permute.xlu0 %802
  %804 = vrot.lane.b32.xlu0 %v605, 124
  %v805 = vpop.permute.xlu0 %804
  %806 = vrot.lane.b32.xlu0 %v606, 124
  %v807 = vpop.permute.xlu0 %806
  %808 = vrot.lane.b32.xlu0 %v607, 124
  %v809 = vpop.permute.xlu0 %808
  %810 = vrot.lane.b32.xlu0 %v608, 124
  %v811 = vpop.permute.xlu0 %810
  %812 = vrot.lane.b32.xlu0 %v609, 124
  %v813 = vpop.permute.xlu0 %812
  %814 = vrot.lane.b32.xlu0 %v610, 124
  %v815 = vpop.permute.xlu0 %814
  %816 = vrot.lane.b32.xlu0 %v611, 124
  %v817 = vpop.permute.xlu0 %816
  %818 = vrot.lane.b32.xlu0 %v612, 124
  %v819 = vpop.permute.xlu0 %818
  %v820 = vsel %vm568, %v797, %v799
  %v821 = vsel %vm568, %v799, %v801
  %v822 = vsel %vm568, %v803, %v805
  %v823 = vsel %vm568, %v805, %v807
  %v824 = vsel %vm568, %v809, %v811
  %v825 = vsel %vm568, %v811, %v813
  %v826 = vsel %vm568, %v815, %v817
  %v827 = vsel %vm568, %v817, %v819
  %v840 = vmax.f32 %v784, %v820
  %v841 = vmax.f32 %v785, %v821
  %v842 = vmax.f32 %v786, %v801
  %v843 = vmax.f32 %v787, %v822
  %v844 = vmax.f32 %v788, %v823
  %v845 = vmax.f32 %v789, %v807
  %v846 = vmax.f32 %v790, %v824
  %v847 = vmax.f32 %v791, %v825
  %v848 = vmax.f32 %v792, %v813
  %v849 = vmax.f32 %v793, %v826
  %v850 = vmax.f32 %v794, %v827
  %v851 = vmax.f32 %v795, %v819
  %852 = vst [vmem:[%s4] sm:$0xff] %v840
  %853 = vst [vmem:[%s4 + $0x8] sm:$0xff] %v841
  %vm854 = vcmask 31744
  %855 = vst.msk [vmem:[%s4 + $0x10] sm:$0xff] %vm854, %v842
  %856 = vst [vmem:[%s4 + $0x18] sm:$0xff] %v843
  %857 = vst [vmem:[%s4 + $0x20] sm:$0xff] %v844
  %858 = vst.msk [vmem:[%s4 + $0x28] sm:$0xff] %vm854, %v845
  %859 = vst [vmem:[%s4 + $0x30] sm:$0xff] %v846
  %860 = vst [vmem:[%s4 + $0x38] sm:$0xff] %v847
  %861 = vst.msk [vmem:[%s4 + $0x40] sm:$0xff] %vm854, %v848
  %862 = vst [vmem:[%s4 + $0x48] sm:$0xff] %v849
  %863 = vst [vmem:[%s4 + $0x50] sm:$0xff] %v850
  %864 = vst.msk [vmem:[%s4 + $0x58] sm:$0xff] %vm854, %v851
  // Predicated region
  $region18: #{convolutional_block.1} parent=0 // pred_check
    _
  $region19: #{convolutional_block.1} parent=0 // pred_check_branch
    %866 = sbr.rel (0) target = $region21
  $region20: #{convolutional_block.1} parent=0 // pred_region
    _
  $region21: #{convolutional_block.1} parent=0 // pred_fallthru
    _
  // Predicated region
  $region22: #{convolutional_block.1} parent=0 // pred_check
    _
  $region23: #{convolutional_block.1} parent=0 // pred_check_branch
    %868 = sbr.rel (0) target = $region25
  $region24: #{convolutional_block.1} parent=0 // pred_region
    _
  $region25: #{convolutional_block.1} parent=0 // pred_fallthru
    _

</llo_original>
